<compile_context>
chip_gen: v5e
topology: v5e:2x2
jax: 0.10.0
libtpu: 0.0.40
codegen_flags: <defaults>
</compile_context>

<pallas_src>
import functools

import jax
import jax.numpy as jnp
from jax import lax
from jax.experimental import pallas as pl
from jax.experimental.pallas import tpu as pltpu


def _round_up(x: int, m: int) -> int:
    return ((x + m - 1) // m) * m


def _choose_tile(dim: int, max_tile: int, align: int, waste_limit: float = 1.10) -> int:
    """Pick a tile size <= max_tile (multiple of `align`) limiting pad waste."""
    if dim <= max_tile:
        return _round_up(dim, align)
    t = max_tile
    while t // 2 >= align and _round_up(dim, t) > waste_limit * dim:
        t //= 2
    return max(t, align)


# ----------------------------------------------------------------------------
# Kernel factory.  Grid = (M/tm, N/tn, K/tk), K (reduction) last.
#   x_ref : (tm, tk)   activation tile (compute dtype, e.g. bf16)
#   w_ref : (tn, tk)   weight tile, original (N, K) orientation
#   b_ref : (1,  tn)   f32 bias tile (only if has_bias)
#   o_ref : (tm, tn)   output tile; doubles as the f32 accumulator when
#                      acc_in_out (output dtype == f32)
#   acc   : (tm, tn)   f32 VMEM scratch (only if not acc_in_out)
# ----------------------------------------------------------------------------
def _make_linear_kernel(has_bias: bool, acc_in_out: bool):
    def kernel(*refs):
        x_ref, w_ref = refs[0], refs[1]
        b_ref = refs[2] if has_bias else None
        o_ref = refs[3] if has_bias else refs[2]
        acc_ref = o_ref if acc_in_out else refs[-1]

        k = pl.program_id(2)

        @pl.when(k == 0)
        def _init():
            acc_ref[...] = jnp.zeros_like(acc_ref)

        # x(tm,tk) . w(tn,tk)^T -> (tm,tn): contract K (lane dim of both
        # operands); no W transpose is materialized in HBM or in-kernel.
        acc_ref[...] += lax.dot_general(
            x_ref[...],
            w_ref[...],
            dimension_numbers=(((1,), (1,)), ((), ())),
            preferred_element_type=jnp.float32,
        )

        if has_bias or not acc_in_out:
            @pl.when(k == pl.num_programs(2) - 1)
            def _finalize():
                out = acc_ref[...]
                if has_bias:
                    out = out + b_ref[...].astype(jnp.float32)
                o_ref[...] = out.astype(o_ref.dtype)

    return kernel


# ----------------------------------------------------------------------------
# Wrapper: flatten to (M, K), pad to tile multiples, cast to the MXU compute
# dtype, run the tiled kernel, slice away padding and restore leading shape.
# ----------------------------------------------------------------------------
@functools.partial(jax.jit, static_argnames=("tm", "tn", "tk", "compute_dtype"))
def msfp_linear_forward(x, weight, bias=None, *, tm=512, tn=1024, tk=1024,
                        compute_dtype=jnp.bfloat16):
    """y = x @ weight.T + bias, matching torch.nn.Linear semantics."""
    out_channels, in_channels = weight.shape
    orig_shape = x.shape
    assert orig_shape[-1] == in_channels

    out_dtype = x.dtype
    x2 = x.reshape(-1, in_channels)  # (M, K)
    m = x2.shape[0]

    # Sublane alignment for the activation/output tiles: 16 rows for 16-bit
    # compute dtypes (sublane packing), 8 rows for f32.
    m_align = 16 if jnp.dtype(compute_dtype).itemsize == 2 else 8

    tm = _choose_tile(m, tm, m_align)
    tn = _choose_tile(out_channels, tn, 128)
    tk = _choose_tile(in_channels, tk, 128)

    m_pad = _round_up(m, tm)
    n_pad = _round_up(out_channels, tn)
    k_pad = _round_up(in_channels, tk)

    # Zero padding: extra K columns contribute 0 to the dot; extra M rows /
    # N columns are sliced off after the kernel.  Cast in HBM so the per-tile
    # DMA moves half the bytes and the MXU runs native bf16.
    x_p = jnp.pad(x2, ((0, m_pad - m), (0, k_pad - in_channels))).astype(compute_dtype)
    w_p = jnp.pad(weight, ((0, n_pad - out_channels),
                           (0, k_pad - in_channels))).astype(compute_dtype)

    has_bias = bias is not None
    acc_in_out = jnp.dtype(out_dtype) == jnp.float32

    grid = (m_pad // tm, n_pad // tn, k_pad // tk)

    in_specs = [
        pl.BlockSpec((tm, tk), lambda i, j, k: (i, k)),   # activations (M, K)
        pl.BlockSpec((tn, tk), lambda i, j, k: (j, k)),   # weight (N, K)
    ]
    operands = [x_p, w_p]
    if has_bias:
        b_p = jnp.pad(bias.astype(jnp.float32),
                      (0, n_pad - out_channels)).reshape(1, n_pad)
        in_specs.append(pl.BlockSpec((1, tn), lambda i, j, k: (0, j)))
        operands.append(b_p)

    scratch_shapes = [] if acc_in_out else [pltpu.VMEM((tm, tn), jnp.float32)]

    out = pl.pallas_call(
        _make_linear_kernel(has_bias, acc_in_out),
        out_shape=jax.ShapeDtypeStruct((m_pad, n_pad), out_dtype),
        grid_spec=pltpu.PrefetchScalarGridSpec(
            num_scalar_prefetch=0,
            grid=grid,
            in_specs=in_specs,
            out_specs=pl.BlockSpec((tm, tn), lambda i, j, k: (i, j)),
            scratch_shapes=scratch_shapes,
        ),
        # M/N parallel (megacore / v7x 2-TC sharding), K resident reduction.
        compiler_params=pltpu.CompilerParams(
            dimension_semantics=("parallel", "parallel", "arbitrary"),
            vmem_limit_bytes=48 * 1024 * 1024,
        ),
    )(*operands)

    out = out[:m, :out_channels]
    return out.reshape(*orig_shape[:-1], out_channels)


# ----------------------------------------------------------------------------
# Deterministic parameter init (mirrors reset_weight_/reset_bias_ defaults:
# kaiming_uniform(a=sqrt(5)) => U(-1/sqrt(fan_in), 1/sqrt(fan_in)); bias same).
# ----------------------------------------------------------------------------
def init_params(key, in_channels, out_channels, dtype=jnp.float32):
    kw, kb = jax.random.split(key)
    bound = 1.0 / jnp.sqrt(jnp.asarray(in_channels, dtype))
    weight = jax.random.uniform(
        kw, (out_channels, in_channels), dtype, minval=-bound, maxval=bound)
    bias = jax.random.uniform(
        kb, (out_channels,), dtype, minval=-bound, maxval=bound)
    return weight, bias


def _ref_linear(x, w, b, compute_dtype=jnp.bfloat16):
    """Reference with matching bf16 operand precision, f32 accumulation."""
    x2 = x.reshape(-1, x.shape[-1]).astype(compute_dtype)
    y = lax.dot_general(x2, w.astype(compute_dtype),
                        dimension_numbers=(((1,), (1,)), ((), ())),
                        preferred_element_type=jnp.float32)
    if b is not None:
        y = y + b.astype(jnp.float32)
    return y.reshape(*x.shape[:-1], w.shape[0]).astype(x.dtype)


if __name__ == "__main__":
    key = jax.random.PRNGKey(0)
    k_x, k_p, k_x2, k_p2 = jax.random.split(key, 4)

    # --- Test 1: small shapes matching the module demo (single padded tile) --
    batch, seq, in_channels, out_channels = 2, 8, 32, 64
    x = jax.random.normal(k_x, (batch, seq, in_channels), jnp.float32)
    weight, bias = init_params(k_p, in_channels, out_channels)

    y = jax.block_until_ready(msfp_linear_forward(x, weight, bias))
    assert y.shape == (batch, seq, out_channels)
    assert jnp.allclose(y, _ref_linear(x, weight, bias), atol=2e-3, rtol=2e-3)

    # --- Test 2: multi-tile (M, N, K) grid with K-accumulation --------------
    batch2, seq2, in2, out2 = 4, 96, 256, 384
    x2 = jax.random.normal(k_x2, (batch2, seq2, in2), jnp.float32)
    weight2, bias2 = init_params(k_p2, in2, out2)

    y2 = jax.block_until_ready(
        msfp_linear_forward(x2, weight2, bias2, tm=128, tn=128, tk=128))
    assert y2.shape == (batch2, seq2, out2)
    assert jnp.allclose(y2, _ref_linear(x2, weight2, bias2), atol=2e-3, rtol=2e-3)

    # --- Test 3: no-bias path (skips bias operand and finalize add) ---------
    y3 = jax.block_until_ready(msfp_linear_forward(x, weight, None))
    assert jnp.allclose(y3, _ref_linear(x, weight, None), atol=2e-3, rtol=2e-3)

    print("KERNEL_OK")
</pallas_src>

<mosaic_0001>
module attributes {stable_mosaic.version = 11 : i64} {
  func.func @kernel(%arg0: i32, %arg1: i32, %arg2: i32, %arg3: memref<16x128xbf16, #tpu.memory_space<vmem>>, %arg4: memref<128x128xbf16, #tpu.memory_space<vmem>>, %arg5: memref<1x128xf32, #tpu.memory_space<vmem>>, %arg6: memref<16x128xf32, #tpu.memory_space<vmem>>) attributes {dimension_semantics = [#tpu.dimension_semantics<parallel>, #tpu.dimension_semantics<parallel>, #tpu.dimension_semantics<arbitrary>], iteration_bounds = array<i64: 1, 1, 1>, scalar_prefetch = 0 : i64, scratch_operands = 0 : i64, tpu.core_type = #tpu.core_type<tc>, window_params = [{transform_indices = @transform_0, window_bounds = array<i64: 16, 128>}, {transform_indices = @transform_1, window_bounds = array<i64: 128, 128>}, {transform_indices = @transform_2, window_bounds = array<i64: 1, 128>}, {transform_indices = @transform_3, window_bounds = array<i64: 16, 128>}]} {
    %c0_i32 = arith.constant 0 : i32
    %0 = arith.cmpi eq, %arg2, %c0_i32 : i32
    %1 = arith.extui %0 : i1 to i32
    %c0_i32_0 = arith.constant 0 : i32
    %2 = arith.cmpi ne, %1, %c0_i32_0 : i32
    scf.if %2 {
      %cst_10 = arith.constant 0.000000e+00 : f32
      %12 = vector.broadcast %cst_10 : f32 to vector<16x128xf32>
      %c0_11 = arith.constant 0 : index
      %c0_12 = arith.constant 0 : index
      %13 = vector.load %arg6[%c0_11, %c0_12] : memref<16x128xf32, #tpu.memory_space<vmem>>, vector<16x128xf32>
      tpu.vector_store %arg6[%c0_11, %c0_12], %12 {strides = array<i32>} : memref<16x128xf32, #tpu.memory_space<vmem>>, vector<16x128xf32>,
    } else {
    }
    %c0 = arith.constant 0 : index
    %c0_1 = arith.constant 0 : index
    %3 = vector.load %arg6[%c0, %c0_1] : memref<16x128xf32, #tpu.memory_space<vmem>>, vector<16x128xf32>
    %c0_2 = arith.constant 0 : index
    %c0_3 = arith.constant 0 : index
    %4 = vector.load %arg3[%c0_2, %c0_3] : memref<16x128xbf16, #tpu.memory_space<vmem>>, vector<16x128xbf16>
    %c0_4 = arith.constant 0 : index
    %c0_5 = arith.constant 0 : index
    %5 = vector.load %arg4[%c0_4, %c0_5] : memref<128x128xbf16, #tpu.memory_space<vmem>>, vector<128x128xbf16>
    %cst = arith.constant dense<0.000000e+00> : vector<16x128xf32>
    %6 = tpu.matmul %4, %5, %cst {dimension_numbers = #tpu.dot_dimension_numbers<[1], [1], [0], [0], [0, 0, 1, 0], [], []>} : vector<16x128xbf16>, vector<128x128xbf16>, vector<16x128xf32> -> vector<16x128xf32>
    %7 = arith.addf %3, %6 : vector<16x128xf32>
    %c0_6 = arith.constant 0 : index
    %c0_7 = arith.constant 0 : index
    %8 = vector.load %arg6[%c0_6, %c0_7] : memref<16x128xf32, #tpu.memory_space<vmem>>, vector<16x128xf32>
    tpu.vector_store %arg6[%c0_6, %c0_7], %7 {strides = array<i32>} : memref<16x128xf32, #tpu.memory_space<vmem>>, vector<16x128xf32>,
    %c0_i32_8 = arith.constant 0 : i32
    %9 = arith.cmpi eq, %arg2, %c0_i32_8 : i32
    %10 = arith.extui %9 : i1 to i32
    %c0_i32_9 = arith.constant 0 : i32
    %11 = arith.cmpi ne, %10, %c0_i32_9 : i32
    scf.if %11 {
      %c0_10 = arith.constant 0 : index
      %c0_11 = arith.constant 0 : index
      %12 = vector.load %arg6[%c0_10, %c0_11] : memref<16x128xf32, #tpu.memory_space<vmem>>, vector<16x128xf32>
      %c0_12 = arith.constant 0 : index
      %c0_13 = arith.constant 0 : index
      %13 = vector.load %arg5[%c0_12, %c0_13] : memref<1x128xf32, #tpu.memory_space<vmem>>, vector<1x128xf32>
      %14 = vector.broadcast %13 : vector<1x128xf32> to vector<16x128xf32>
      %15 = arith.addf %12, %14 : vector<16x128xf32>
      %c0_14 = arith.constant 0 : index
      %c0_15 = arith.constant 0 : index
      %16 = vector.load %arg6[%c0_14, %c0_15] : memref<16x128xf32, #tpu.memory_space<vmem>>, vector<16x128xf32>
      tpu.vector_store %arg6[%c0_14, %c0_15], %15 {strides = array<i32>} : memref<16x128xf32, #tpu.memory_space<vmem>>, vector<16x128xf32>,
    } else {
    }
    return
  }
  func.func @transform_0(%arg0: i32, %arg1: i32, %arg2: i32) -> (i32, i32) {
    %c0_i32 = arith.constant 0 : i32
    return %arg0, %arg2 : i32, i32
  }
  func.func @transform_1(%arg0: i32, %arg1: i32, %arg2: i32) -> (i32, i32) {
    %c0_i32 = arith.constant 0 : i32
    return %arg1, %arg2 : i32, i32
  }
  func.func @transform_2(%arg0: i32, %arg1: i32, %arg2: i32) -> (i32, i32) {
    %c0_i32 = arith.constant 0 : i32
    %c0_i32_0 = arith.constant 0 : i32
    return %c0_i32, %arg1 : i32, i32
  }
  func.func @transform_3(%arg0: i32, %arg1: i32, %arg2: i32) -> (i32, i32) {
    %c0_i32 = arith.constant 0 : i32
    return %arg0, %arg1 : i32, i32
  }
}

</mosaic_0001>

<llo_original>
// kernel: msfp_linear_forward.1
$region0: #{msfp_linear_forward.1}
  #allocation0 [shape = 'u32[]', space=smem, size = 0x4, offset = 0x4, fixed_abs, tag = 'smem constant byte address 0x4 - core index']
  #allocation1 [shape = 'u32[72,128]{1,0:T(1,128)}', space=vmem, size = 0x9000, scoped, tag = 'internal scratch']
  %s0 = inlined_call_operand.vmem [shape: bf16[16,128], index: 0, kind: input, shape index: {}]
  %s1 = inlined_call_operand.vmem [shape: bf16[128,128], index: 1, kind: input, shape index: {}]
  %s2 = inlined_call_operand.vmem [shape: f32[1,128], index: 2, kind: input, shape index: {}]
  %s3 = inlined_call_operand.vmem [shape: f32[16,128], index: 3, kind: output, shape index: {}]
  %s4 = sld [smem:[#allocation0]]
  $region30: #{msfp_linear_forward.1} parent=0
    _
  %s6 = ssub.s32 1, %s4
  %s7 = scalar_select 0, %s6, %s4
  // Predicated region
  $region2: #{msfp_linear_forward.1} parent=0 // pred_check
    _
  $region3: #{msfp_linear_forward.1} parent=0 // pred_check_branch
    %9 = sbr.rel (0) target = $region5
  $region4: #{msfp_linear_forward.1} parent=0 // pred_region
    _
  $region5: #{msfp_linear_forward.1} parent=0 // pred_fallthru
    _
  // Predicated region
  $region6: #{msfp_linear_forward.1} parent=0 // pred_check
    _
  $region7: #{msfp_linear_forward.1} parent=0 // pred_check_branch
    %11 = sbr.rel (0) target = $region9
  $region8: #{msfp_linear_forward.1} parent=0 // pred_region
    _
  $region9: #{msfp_linear_forward.1} parent=0 // pred_fallthru
    _
  // Predicated region
  $region10: #{msfp_linear_forward.1} parent=0 // pred_check
    _
  $region11: #{msfp_linear_forward.1} parent=0 // pred_check_branch
    %13 = sbr.rel (0) target = $region13
  $region12: #{msfp_linear_forward.1} parent=0 // pred_region
    _
  $region13: #{msfp_linear_forward.1} parent=0 // pred_fallthru
    _
  %p14 = scmp.eq.s32.totalorder 0, 0
  // Predicated region
  $region14: #{msfp_linear_forward.1} parent=0 // pred_check
    %p15 = pneg %p14
  $region15: #{msfp_linear_forward.1} parent=0 // pred_check_branch
    %17 = sbr.rel (%p15) target = $region17
  $region16: #{msfp_linear_forward.1} parent=0 // pred_region
    %18 = vst [vmem:[%s3] sm:$0xff] 0.0
    %19 = vst [vmem:[%s3 + $0x8] sm:$0xff] 0.0
  $region17: #{msfp_linear_forward.1} parent=0 // pred_fallthru
    _
  %v20 = vld [vmem:[%s3] sm:$0xff]
  %v21 = vld [vmem:[%s3 + $0x8] sm:$0xff]
  %v22 = vld [vmem:[%s0] sm:$0xf]
  %v23 = vld [vmem:[%s0 + $0x4] sm:$0xf]
  %v24 = vld [vmem:[%s1] sm:$0xf]
  %v25 = vld [vmem:[%s1 + $0x4] sm:$0xf]
  %v26 = vld [vmem:[%s1 + $0x8] sm:$0xf]
  %v27 = vld [vmem:[%s1 + $0xc] sm:$0xf]
  %v28 = vld [vmem:[%s1 + $0x10] sm:$0xf]
  %v29 = vld [vmem:[%s1 + $0x14] sm:$0xf]
  %v30 = vld [vmem:[%s1 + $0x18] sm:$0xf]
  %v31 = vld [vmem:[%s1 + $0x1c] sm:$0xf]
  %v32 = vld [vmem:[%s1 + $0x20] sm:$0xf]
  %v33 = vld [vmem:[%s1 + $0x24] sm:$0xf]
  %v34 = vld [vmem:[%s1 + $0x28] sm:$0xf]
  %v35 = vld [vmem:[%s1 + $0x2c] sm:$0xf]
  %v36 = vld [vmem:[%s1 + $0x30] sm:$0xf]
  %v37 = vld [vmem:[%s1 + $0x34] sm:$0xf]
  %v38 = vld [vmem:[%s1 + $0x38] sm:$0xf]
  %v39 = vld [vmem:[%s1 + $0x3c] sm:$0xf]
  %v42 = vunpack.c.l.b16 %v22
  %v43 = vunpack.c.l.b16 %v23
  %v44 = vpack.c.b16 %v43, %v42
  %v62 = vunpack.c.l.b16 %v24
  %v63 = vunpack.c.l.b16 %v25
  %v64 = vunpack.c.l.b16 %v26
  %v65 = vunpack.c.l.b16 %v27
  %v66 = vunpack.c.l.b16 %v28
  %v67 = vunpack.c.l.b16 %v29
  %v68 = vunpack.c.l.b16 %v30
  %v69 = vunpack.c.l.b16 %v31
  %v70 = vunpack.c.l.b16 %v32
  %v71 = vunpack.c.l.b16 %v33
  %v72 = vunpack.c.l.b16 %v34
  %v73 = vunpack.c.l.b16 %v35
  %v74 = vunpack.c.l.b16 %v36
  %v75 = vunpack.c.l.b16 %v37
  %v76 = vunpack.c.l.b16 %v38
  %v77 = vunpack.c.l.b16 %v39
  %v78 = vpack.c.b16 %v63, %v62
  %v79 = vpack.c.b16 %v65, %v64
  %v80 = vpack.c.b16 %v67, %v66
  %v81 = vpack.c.b16 %v69, %v68
  %v82 = vpack.c.b16 %v71, %v70
  %v83 = vpack.c.b16 %v73, %v72
  %v84 = vpack.c.b16 %v75, %v74
  %v85 = vpack.c.b16 %v77, %v76
  %94 = vmatpush.bf16.xpose.msra.mxu0 %v85
  %95 = vmatpush.bf16.xpose.msra.mxu0 %v84
  %96 = vmatpush.bf16.xpose.msra.mxu0 %v83
  %97 = vmatpush.bf16.xpose.msra.mxu0 %v82
  %98 = vmatpush.bf16.xpose.msra.mxu0 %v81
  %99 = vmatpush.bf16.xpose.msra.mxu0 %v80
  %100 = vmatpush.bf16.xpose.msra.mxu0 %v79
  %101 = vmatpush.bf16.xpose.msra.mxu0 %v78
  %102 = vmatmul.bf16.gmra.mxu0 %v44
  %v103 = vpop.f32.mrf.mxu0
  %v104 = vadd.f32 0.0, %v103
  %v105 = vpop.f32.mrf.mxu0
  %v106 = vadd.f32 0.0, %v105
  %107 = vdwg.mxu0
  %v108 = vadd.f32 %v20, %v104
  %v109 = vadd.f32 %v21, %v106
  %110 = vst [vmem:[%s3] sm:$0xff] %v108
  %111 = vst [vmem:[%s3 + $0x8] sm:$0xff] %v109
  // Predicated region
  $region18: #{msfp_linear_forward.1} parent=0 // pred_check
    %p112 = pneg %p14
  $region19: #{msfp_linear_forward.1} parent=0 // pred_check_branch
    %114 = sbr.rel (%p112) target = $region21
  $region20: #{msfp_linear_forward.1} parent=0 // pred_region
    %v115 = vld [vmem:[%s3] sm:$0xff]
    %v116 = vld [vmem:[%s3 + $0x8] sm:$0xff]
    %v117 = vld [vmem:[%s2] sm:$0x1]
    %v119 = vperm.slane %v117, 0
    %v121 = vadd.f32 %v115, %v119
    %v122 = vadd.f32 %v116, %v119
    %123 = vst [vmem:[%s3] sm:$0xff] %v121
    %124 = vst [vmem:[%s3 + $0x8] sm:$0xff] %v122
  $region21: #{msfp_linear_forward.1} parent=0 // pred_fallthru
    _
  // Predicated region
  $region22: #{msfp_linear_forward.1} parent=0 // pred_check
    _
  $region23: #{msfp_linear_forward.1} parent=0 // pred_check_branch
    %126 = sbr.rel (0) target = $region25
  $region24: #{msfp_linear_forward.1} parent=0 // pred_region
    _
  $region25: #{msfp_linear_forward.1} parent=0 // pred_fallthru
    _
  // Predicated region
  $region26: #{msfp_linear_forward.1} parent=0 // pred_check
    _
  $region27: #{msfp_linear_forward.1} parent=0 // pred_check_branch
    %128 = sbr.rel (0) target = $region29
  $region28: #{msfp_linear_forward.1} parent=0 // pred_region
    _
  $region29: #{msfp_linear_forward.1} parent=0 // pred_fallthru
    _

</llo_original>
